<compile_context>
chip_gen: v7x
topology: tpu7x:2x2x1
jax: 0.10.0
libtpu: 0.0.40
codegen_flags: <defaults>
</compile_context>

<pallas_src>
import functools

import jax
import jax.numpy as jnp
from jax.experimental import pallas as pl
from jax.experimental.pallas import tpu as pltpu


def get_rotary_embeddings(tsz: int, embed_dim: int, dtype, offset: int = 0,
                          base: int = 10000) -> jnp.ndarray:
    """Port of the PyTorch get_rotary_embeddings: returns (2, tsz, embed_dim // 2)."""
    assert embed_dim % 4 == 0, f"Embedding dimension must be divisible by 4, got {embed_dim}"
    half_d = embed_dim // 2
    theta = 1.0 / (base ** (jnp.arange(0, half_d, 2, dtype=jnp.float32) / half_d))
    seq_idx = jnp.arange(offset, tsz + offset, dtype=jnp.float32)
    idx_theta_tc = jnp.einsum("t,c->tc", seq_idx, theta)
    idx_theta2_tc = jnp.concatenate([idx_theta_tc, idx_theta_tc], axis=1)
    emb_2tc = jnp.stack((jnp.cos(idx_theta2_tc), jnp.sin(idx_theta2_tc)), axis=0)
    return emb_2tc.astype(dtype)


def _rope_tables_f32(tsz: int, embed_dim: int, offset: int, base: int):
    """float32 cos / sign-folded-sin tables built directly at `offset` (shape (tsz, half_d))."""
    half_d = embed_dim // 2
    quarter_d = embed_dim // 4
    theta = 1.0 / (base ** (jnp.arange(0, half_d, 2, dtype=jnp.float32) / half_d))
    seq_idx = jnp.arange(offset, tsz + offset, dtype=jnp.float32)
    idx_theta_tc = jnp.einsum("t,c->tc", seq_idx, theta)
    idx_theta2_tc = jnp.concatenate([idx_theta_tc, idx_theta_tc], axis=1)   # (T, half_d)
    cos_tc = jnp.cos(idx_theta2_tc)
    sin_tc = jnp.sin(idx_theta2_tc)
    # Fold the sign of neg_half = cat([-x[q:], x[:q]]) into the sin table so the
    # kernel only needs a lane rotation.
    sin_signed_tc = jnp.concatenate([-sin_tc[:, :quarter_d], sin_tc[:, quarter_d:]], axis=1)
    return cos_tc, sin_signed_tc


def _rope_kernel(x_ref, cos_ref, sin_ref, o_ref, *, half_d, quarter_d, use_roll):
    # x_ref / o_ref: (TILE_T, C) in the activation dtype (batch dim squeezed).
    # cos_ref / sin_ref: (TILE_T, half_d) float32; sin already carries the sign.
    x_rope = x_ref[:, :half_d].astype(jnp.float32)

    if use_roll:
        # cat([x_rope[:, quarter:], x_rope[:, :quarter]]) == roll by quarter_d
        # (half_d == 2 * quarter_d, so roll direction is irrelevant).
        # pltpu.roll needs a non-negative axis: last axis of the 2-D tile is 1.
        rolled = pltpu.roll(x_rope, shift=quarter_d, axis=1)
    else:
        # Fallback for lane-unaligned half_d (sign already folded into sin).
        rolled = jnp.concatenate(
            [x_rope[:, quarter_d:], x_rope[:, :quarter_d]], axis=-1)

    rotated = x_rope * cos_ref[...] + rolled * sin_ref[...]

    if use_roll:
        # half_d is a multiple of 128 -> lane-aligned direct slice stores,
        # no output concat / no extra VMEM temporary.
        o_ref[:, :half_d] = rotated.astype(o_ref.dtype)
        o_ref[:, half_d:] = x_ref[:, half_d:]
    else:
        # Unaligned half_d: do one full, unmasked lane-dense tile store.
        x_pass = x_ref[:, half_d:].astype(jnp.float32)
        o_ref[...] = jnp.concatenate([rotated, x_pass], axis=-1).astype(o_ref.dtype)


# VMEM budgeting: works within the smallest default scoped VMEM across
# generations (v5e 16 MiB default is raised explicitly; v7x physical 64 MiB).
_VMEM_LIMIT_BYTES = 32 * 1024 * 1024
_VMEM_BLOCK_BUDGET_BYTES = 24 * 1024 * 1024


def _choose_tile_t(tsz: int, embed_dim: int, itemsize: int) -> int:
    half_d = embed_dim // 2
    # Live block bytes per time-row: double-buffered x + out (activation dtype)
    # plus double-buffered f32 cos & sin.
    bytes_per_row = 2 * (2 * embed_dim * itemsize) + 2 * (2 * half_d * 4)
    tile = _VMEM_BLOCK_BUDGET_BYTES // bytes_per_row
    sublane = 8 if itemsize >= 4 else (16 if itemsize == 2 else 32)
    tile = max(sublane, (tile // sublane) * sublane)
    return int(min(tile, tsz))


def rotary_embeddings_forward(x_btc: jnp.ndarray, offset: int = 0,
                              base: int = 10000) -> jnp.ndarray:
    """Forward pass of RotaryEmbeddings (times_bt=None path)."""
    # TODO(synk): times_bt gather path (per-batch time indices) not implemented.
    b, tsz, embed_dim = x_btc.shape
    assert embed_dim % 4 == 0, f"Embedding dimension must be divisible by 4, got {embed_dim}"
    half_d = embed_dim // 2
    quarter_d = embed_dim // 4

    # Tables built directly at the requested offset, kept in float32.
    cos_tc, sin_signed_tc = _rope_tables_f32(tsz, embed_dim, offset, base)

    itemsize = jnp.dtype(x_btc.dtype).itemsize
    tile_t = _choose_tile_t(tsz, embed_dim, itemsize)
    use_roll = (half_d % 128 == 0)   # lane-aligned rotate-half -> XLU roll

    kernel = functools.partial(
        _rope_kernel, half_d=half_d, quarter_d=quarter_d, use_roll=use_roll)

    grid = (b, pl.cdiv(tsz, tile_t))
    out = pl.pallas_call(
        kernel,
        out_shape=jax.ShapeDtypeStruct((b, tsz, embed_dim), x_btc.dtype),
        grid=grid,
        in_specs=[
            pl.BlockSpec((pl.Squeezed(), tile_t, embed_dim), lambda i, t: (i, t, 0)),
            pl.BlockSpec((tile_t, half_d), lambda i, t: (t, 0)),
            pl.BlockSpec((tile_t, half_d), lambda i, t: (t, 0)),
        ],
        out_specs=pl.BlockSpec((pl.Squeezed(), tile_t, embed_dim), lambda i, t: (i, t, 0)),
        compiler_params=pltpu.CompilerParams(
            dimension_semantics=("parallel", "parallel"),
            vmem_limit_bytes=_VMEM_LIMIT_BYTES,
        ),
    )(x_btc, cos_tc, sin_signed_tc)
    return out


def _reference_forward(x_btc, offset=0, base=10000):
    """Pure-JAX reference mirroring the PyTorch module."""
    _, tsz, embed_dim = x_btc.shape
    half_d = embed_dim // 2
    quarter_d = embed_dim // 4
    emb_2tc = get_rotary_embeddings(tsz + offset, embed_dim, x_btc.dtype, 0, base)
    cos_tc, sin_tc = emb_2tc[0], emb_2tc[1]
    x_rope = x_btc[..., :half_d]
    x_pass = x_btc[..., half_d:]
    neg_half = jnp.concatenate([-x_rope[..., quarter_d:], x_rope[..., :quarter_d]], axis=-1)
    cos_part = cos_tc[None, offset:offset + tsz]
    sin_part = sin_tc[None, offset:offset + tsz]
    x_rope = x_rope * cos_part + neg_half * sin_part
    return jnp.concatenate([x_rope, x_pass], axis=-1)


if __name__ == "__main__":
    key = jax.random.PRNGKey(0)
    # Small but lane-friendly: embed_dim // 2 == 128 so the rope/pass split and
    # the rotate-half land on 128-lane boundaries.
    B, T, C = 2, 16, 256
    x = jax.random.normal(key, (B, T, C), dtype=jnp.float32)

    out = rotary_embeddings_forward(x, offset=0, base=10000)
    out = jax.block_until_ready(out)

    ref = _reference_forward(x, offset=0, base=10000)
    assert out.shape == (B, T, C)
    assert jnp.allclose(out, ref, atol=1e-5, rtol=1e-5)

    # Also exercise a nonzero offset (decode-style) at a tiny shape.
    out_off = jax.block_until_ready(rotary_embeddings_forward(x, offset=3, base=10000))
    ref_off = _reference_forward(x, offset=3, base=10000)
    assert jnp.allclose(out_off, ref_off, atol=1e-5, rtol=1e-5)

    print("KERNEL_OK")
</pallas_src>

<mosaic_0001>
module attributes {stable_mosaic.version = 11 : i64} {
  func.func @_rope_kernel(%arg0: i32, %arg1: i32, %arg2: memref<1x16x256xf32, #tpu.memory_space<vmem>>, %arg3: memref<16x128xf32, #tpu.memory_space<vmem>>, %arg4: memref<16x128xf32, #tpu.memory_space<vmem>>, %arg5: memref<1x16x256xf32, #tpu.memory_space<vmem>>) attributes {dimension_semantics = [#tpu.dimension_semantics<parallel>, #tpu.dimension_semantics<parallel>], iteration_bounds = array<i64: 2, 1>, scalar_prefetch = 0 : i64, scratch_operands = 0 : i64, tpu.core_type = #tpu.core_type<tc>, window_params = [{transform_indices = @transform_0, window_bounds = array<i64: 1, 16, 256>}, {transform_indices = @transform_1, window_bounds = array<i64: 16, 128>}, {transform_indices = @transform_2, window_bounds = array<i64: 16, 128>}, {transform_indices = @transform_3, window_bounds = array<i64: 1, 16, 256>}]} {
    %c0 = arith.constant 0 : index
    %c0_0 = arith.constant 0 : index
    %c0_1 = arith.constant 0 : index
    %0 = vector.load %arg2[%c0, %c0_0, %c0_1] : memref<1x16x256xf32, #tpu.memory_space<vmem>>, vector<1x16x128xf32>
    %1 = vector.shape_cast %0 : vector<1x16x128xf32> to vector<16x128xf32>
    %c64_i32 = arith.constant 64 : i32
    %2 = tpu.dynamic_rotate %1 by %c64_i32 dim 1 : vector<16x128xf32>, i32 -> vector<16x128xf32>
    %c0_2 = arith.constant 0 : index
    %c0_3 = arith.constant 0 : index
    %3 = vector.load %arg3[%c0_2, %c0_3] : memref<16x128xf32, #tpu.memory_space<vmem>>, vector<16x128xf32>
    %4 = arith.mulf %1, %3 : vector<16x128xf32>
    %c0_4 = arith.constant 0 : index
    %c0_5 = arith.constant 0 : index
    %5 = vector.load %arg4[%c0_4, %c0_5] : memref<16x128xf32, #tpu.memory_space<vmem>>, vector<16x128xf32>
    %6 = arith.mulf %2, %5 : vector<16x128xf32>
    %7 = arith.addf %4, %6 : vector<16x128xf32>
    %c0_6 = arith.constant 0 : index
    %c0_7 = arith.constant 0 : index
    %c0_8 = arith.constant 0 : index
    %8 = vector.load %arg5[%c0_6, %c0_7, %c0_8] : memref<1x16x256xf32, #tpu.memory_space<vmem>>, vector<1x16x128xf32>
    %9 = vector.shape_cast %8 : vector<1x16x128xf32> to vector<16x128xf32>
    %10 = vector.shape_cast %7 : vector<16x128xf32> to vector<1x16x128xf32>
    tpu.vector_store %arg5[%c0_6, %c0_7, %c0_8], %10 {strides = array<i32>} : memref<1x16x256xf32, #tpu.memory_space<vmem>>, vector<1x16x128xf32>,
    %c0_9 = arith.constant 0 : index
    %c0_10 = arith.constant 0 : index
    %c128 = arith.constant 128 : index
    %11 = vector.load %arg2[%c0_9, %c0_10, %c128] : memref<1x16x256xf32, #tpu.memory_space<vmem>>, vector<1x16x128xf32>
    %12 = vector.shape_cast %11 : vector<1x16x128xf32> to vector<16x128xf32>
    %c0_11 = arith.constant 0 : index
    %c0_12 = arith.constant 0 : index
    %c128_13 = arith.constant 128 : index
    %13 = vector.load %arg5[%c0_11, %c0_12, %c128_13] : memref<1x16x256xf32, #tpu.memory_space<vmem>>, vector<1x16x128xf32>
    %14 = vector.shape_cast %13 : vector<1x16x128xf32> to vector<16x128xf32>
    %15 = vector.shape_cast %12 : vector<16x128xf32> to vector<1x16x128xf32>
    tpu.vector_store %arg5[%c0_11, %c0_12, %c128_13], %15 {strides = array<i32>} : memref<1x16x256xf32, #tpu.memory_space<vmem>>, vector<1x16x128xf32>,
    return
  }
  func.func @transform_0(%arg0: i32, %arg1: i32) -> (i32, i32, i32) {
    %c0_i32 = arith.constant 0 : i32
    %c0_i32_0 = arith.constant 0 : i32
    return %arg0, %arg1, %c0_i32 : i32, i32, i32
  }
  func.func @transform_1(%arg0: i32, %arg1: i32) -> (i32, i32) {
    %c0_i32 = arith.constant 0 : i32
    %c0_i32_0 = arith.constant 0 : i32
    return %arg1, %c0_i32 : i32, i32
  }
  func.func @transform_2(%arg0: i32, %arg1: i32) -> (i32, i32) {
    %c0_i32 = arith.constant 0 : i32
    %c0_i32_0 = arith.constant 0 : i32
    return %arg1, %c0_i32 : i32, i32
  }
  func.func @transform_3(%arg0: i32, %arg1: i32) -> (i32, i32, i32) {
    %c0_i32 = arith.constant 0 : i32
    %c0_i32_0 = arith.constant 0 : i32
    return %arg0, %arg1, %c0_i32 : i32, i32, i32
  }
}

</mosaic_0001>

<llo_original>
// kernel: tpu_custom_call.1
$region0: #{tpu_custom_call.1}
  #allocation0 [shape = 'u32[]', space=smem, size = 0x4, offset = 0x4, fixed_abs, tag = 'smem constant byte address 0x4 - core index']
  #allocation1 [shape = 'u32[144,128]{1,0:T(1,128)}', space=vmem, size = 0x12000, scoped, tag = 'internal scratch']
  %s0 = inlined_call_operand.hbm [shape: f32[2,16,256], index: 0, kind: input, shape index: {}]
  %s1 = inlined_call_operand.hbm [shape: f32[16,128], index: 1, kind: input, shape index: {}]
  %s2 = inlined_call_operand.hbm [shape: f32[16,128], index: 2, kind: input, shape index: {}]
  %s3 = inlined_call_operand.hbm [shape: f32[2,16,256], index: 3, kind: output, shape index: {}]
  %s4 = sld [smem:[#allocation0]]
  $region57: #{tpu_custom_call.1} parent=0
    _
  %s6 = ssub.s32 1, %s4
  %s7 = scalar_select 0, %s6, %s4
  $region1: #{tpu_custom_call.1} parent=0
    #allocation2 [shape = 'u8[32768]{0}', space=vmem, size = 0x8000, scoped, tag = 'input window, operand 0']
    #allocation3 [shape = 's32[2]{0}', space=sflag, size = 0x8, scoped, tag = 'scoped memory for tpu_custom_call.1']
    #allocation4 [shape = 's32[2]{0}', space=sflag, size = 0x8, scoped, tag = 'scoped memory for tpu_custom_call.1']
    #allocation5 [shape = 'u8[8192]{0}', space=vmem, size = 0x2000, scoped, tag = 'input window, operand 1, single buffered']
    #allocation6 [shape = 's32[1]{0}', space=sflag, size = 0x4, scoped, tag = 'scoped memory for tpu_custom_call.1']
    #allocation7 [shape = 'u8[8192]{0}', space=vmem, size = 0x2000, scoped, tag = 'input window, operand 2, single buffered']
    #allocation8 [shape = 'u8[32768]{0}', space=vmem, size = 0x8000, scoped, tag = 'output window, operand 0']
    %8 = vsyncpa [#allocation3], 0
    %s9 = scalar_lea.sflag [#allocation3], 1
    %10 = vsyncpa %s9, 0
    %11 = vsyncpa [#allocation6], 0
    %12 = vsyncpa [#allocation4], 0
    %s13 = scalar_lea.sflag [#allocation4], 1
    %14 = vsyncpa %s13, 0
    loop: start=0, step=1, limit=4
    $region2: #{tpu_custom_call.1} parent=1 // loop_pre_header
      _
    $region3: #{tpu_custom_call.1} parent=1 // loop_header
      %s16 = sphi 0, %s20
      %p17 = scmp.ge.s32.totalorder %s16, 4
      %s23 = sphi 0, %s35
      %s24 = sphi 0, %s31
      %s25 = sphi 0, %s23
      %s26 = sphi 0, %s24
      %s27 = sphi 0, %s25
      %s28 = sphi 0, %s26
      %s40 = sphi 0, %s42
      %s43 = sphi 0, %s40
      %s44 = sphi 0, %s43
      %s60 = sphi 0, %s44
      %s66 = sphi 0, %s68
      %s69 = sphi 0, %s66
      %s70 = sphi 0, %s69
      %s86 = sphi 0, %s70
      %s92 = sphi 0, %s94
      %s95 = sphi 0, %s92
      %s96 = sphi 0, %s95
      %s112 = sphi 0, %s96
      %s120 = sphi 0, %s122
      %s123 = sphi 0, %s120
      %s124 = sphi 0, %s123
      %s140 = sphi 0, %s124
    $region4: #{tpu_custom_call.1} parent=1 // loop_header_branch
      %19 = sbr.rel (%p17) target = $region8
    $region5: #{tpu_custom_call.1} parent=1 // loop_body
      %s21 = ssub.s32 %s16, 1
      %s22 = ssub.s32 %s16, 2
      %s29 = sadd.s32 1, %s24
      %p30 = scmp.ge.s32.totalorder %s29, 1
      %s31 = scalar_select %p30, 0, %s29
      %s32 = sadd.s32 1, %s23
      %s33 = scalar_select %p30, %s32, %s23
      %p34 = scmp.ge.s32.totalorder %s33, 2
      %s35 = scalar_select %p34, 0, %s33
      %s36 = ssub.s32 %s23, %s35
      %s37 = ssub.s32 %s24, %s31
      %s38 = sor.u32 %s36, %s37
      %p39 = scmp.eq.s32.totalorder %s38, 0
      %s41 = sadd.s32 %s40, 1
      %s42 = scalar_select %p39, %s40, %s41
      %p45 = pneg %p39
      %p46 = scmp.eq.s32.totalorder %s16, 1
      %p47 = por %p45, %p46
      %p48 = scmp.ne.s32.totalorder %s40, %s43
      %p49 = scmp.eq.s32.totalorder %s16, 0
      %p50 = por %p48, %p49
      %p51 = scmp.ne.s32.totalorder %s40, %s43
      %p52 = scmp.eq.s32.totalorder %s21, 1
      %p53 = por %p51, %p52
      %p54 = scmp.ne.s32.totalorder %s43, %s44
      %p55 = scmp.eq.s32.totalorder %s21, 0
      %p56 = por %p54, %p55
      %p57 = scmp.ne.s32.totalorder %s43, %s44
      %p58 = scmp.eq.s32.totalorder %s22, 1
      %p59 = por %p57, %p58
      %p61 = scmp.ne.s32.totalorder %s44, %s60
      %p62 = scmp.eq.s32.totalorder %s22, 0
      %p63 = por %p61, %p62
      %s64 = ssub.s32 %s24, %s31
      %p65 = scmp.eq.s32.totalorder %s64, 0
      %s67 = sadd.s32 %s66, 1
      %s68 = scalar_select %p65, %s66, %s67
      %p71 = pneg %p65
      %p72 = scmp.eq.s32.totalorder %s16, 1
      %p73 = por %p71, %p72
      %p74 = scmp.ne.s32.totalorder %s66, %s69
      %p75 = scmp.eq.s32.totalorder %s16, 0
      %p76 = por %p74, %p75
      %p77 = scmp.ne.s32.totalorder %s66, %s69
      %p78 = scmp.eq.s32.totalorder %s21, 1
      %p79 = por %p77, %p78
      %p80 = scmp.ne.s32.totalorder %s69, %s70
      %p81 = scmp.eq.s32.totalorder %s21, 0
      %p82 = por %p80, %p81
      %p83 = scmp.ne.s32.totalorder %s69, %s70
      %p84 = scmp.eq.s32.totalorder %s22, 1
      %p85 = por %p83, %p84
      %p87 = scmp.ne.s32.totalorder %s70, %s86
      %p88 = scmp.eq.s32.totalorder %s22, 0
      %p89 = por %p87, %p88
      %s90 = ssub.s32 %s24, %s31
      %p91 = scmp.eq.s32.totalorder %s90, 0
      %s93 = sadd.s32 %s92, 1
      %s94 = scalar_select %p91, %s92, %s93
      %p97 = pneg %p91
      %p98 = scmp.eq.s32.totalorder %s16, 1
      %p99 = por %p97, %p98
      %p100 = scmp.ne.s32.totalorder %s92, %s95
      %p101 = scmp.eq.s32.totalorder %s16, 0
      %p102 = por %p100, %p101
      %p103 = scmp.ne.s32.totalorder %s92, %s95
      %p104 = scmp.eq.s32.totalorder %s21, 1
      %p105 = por %p103, %p104
      %p106 = scmp.ne.s32.totalorder %s95, %s96
      %p107 = scmp.eq.s32.totalorder %s21, 0
      %p108 = por %p106, %p107
      %p109 = scmp.ne.s32.totalorder %s95, %s96
      %p110 = scmp.eq.s32.totalorder %s22, 1
      %p111 = por %p109, %p110
      %p113 = scmp.ne.s32.totalorder %s96, %s112
      %p114 = scmp.eq.s32.totalorder %s22, 0
      %p115 = por %p113, %p114
      %s116 = ssub.s32 %s23, %s35
      %s117 = ssub.s32 %s24, %s31
      %s118 = sor.u32 %s116, %s117
      %p119 = scmp.eq.s32.totalorder %s118, 0
      %s121 = sadd.s32 %s120, 1
      %s122 = scalar_select %p119, %s120, %s121
      %p125 = pneg %p119
      %p126 = scmp.eq.s32.totalorder %s16, 1
      %p127 = por %p125, %p126
      %p128 = scmp.ne.s32.totalorder %s120, %s123
      %p129 = scmp.eq.s32.totalorder %s16, 0
      %p130 = por %p128, %p129
      %p131 = scmp.ne.s32.totalorder %s120, %s123
      %p132 = scmp.eq.s32.totalorder %s21, 1
      %p133 = por %p131, %p132
      %p134 = scmp.ne.s32.totalorder %s123, %s124
      %p135 = scmp.eq.s32.totalorder %s21, 0
      %p136 = por %p134, %p135
      %p137 = scmp.ne.s32.totalorder %s123, %s124
      %p138 = scmp.eq.s32.totalorder %s22, 1
      %p139 = por %p137, %p138
      %p141 = scmp.ne.s32.totalorder %s124, %s140
      %p142 = scmp.eq.s32.totalorder %s22, 0
      %p143 = por %p141, %p142
      %p144 = scmp.le.s32.totalorder 1, %s16
      %p145 = scmp.lt.s32.totalorder %s16, 3
      %p146 = pnand %p144, %p145
      %p147 = pneg %p146
      // Predicated region
      $region9: #{tpu_custom_call.1} parent=5 // pred_check
        _
      $region10: #{tpu_custom_call.1} parent=5 // pred_check_branch
        %149 = sbr.rel (%p146) target = $region12
      $region11: #{tpu_custom_call.1} parent=5 // pred_region
        %s150 = ssub.s32 %s16, 1
        // Predicated region
        $region13: #{tpu_custom_call.1} parent=11 // pred_check
          %p151 = pneg %p82
        $region14: #{tpu_custom_call.1} parent=11 // pred_check_branch
          %153 = sbr.rel (%p151) target = $region16
        $region15: #{tpu_custom_call.1} parent=11 // pred_region
          %s154 = smul.u32 2, %s26
          %s156 = ssub.s32 256, 256
          %157 = vsyncadd [#allocation6], %s156
          %s158 = smul.addr %s154, 128
          %s159 = scalar_lea.hbm %s1, %s158
          %s160 = sshll.u32 [#allocation5], 4
          %s161 = int_to_ptr.vmem [resolvable:$true] %s160
          %166 = dma.hbm_to_vmem [thread:$0]  %s159, 256, %s161, [#allocation6], 128, 128, 8
        $region16: #{tpu_custom_call.1} parent=11 // pred_fallthru
          _
        // Predicated region
        $region17: #{tpu_custom_call.1} parent=11 // pred_check
          %p167 = pneg %p108
        $region18: #{tpu_custom_call.1} parent=11 // pred_check_branch
          %169 = sbr.rel (%p167) target = $region20
        $region19: #{tpu_custom_call.1} parent=11 // pred_region
          %s170 = smul.u32 2, %s26
          %s172 = ssub.s32 256, 256
          %173 = vsyncadd [#allocation6], %s172
          %s174 = smul.addr %s170, 128
          %s175 = scalar_lea.hbm %s2, %s174
          %s176 = sshll.u32 [#allocation7], 4
          %s177 = int_to_ptr.vmem [resolvable:$true] %s176
          %182 = dma.hbm_to_vmem [thread:$0]  %s175, 256, %s177, [#allocation6], 128, 128, 8
        $region20: #{tpu_custom_call.1} parent=11 // pred_fallthru
          _
      $region12: #{tpu_custom_call.1} parent=5 // pred_fallthru
        _
      %p183 = scmp.lt.s32.totalorder %s16, 2
      // Predicated region
      $region21: #{tpu_custom_call.1} parent=5 // pred_check
        %p184 = pneg %p183
      $region22: #{tpu_custom_call.1} parent=5 // pred_check_branch
        %186 = sbr.rel (%p184) target = $region24
      $region23: #{tpu_custom_call.1} parent=5 // pred_region
        // Predicated region
        $region25: #{tpu_custom_call.1} parent=23 // pred_check
          %p187 = pneg %p50
        $region26: #{tpu_custom_call.1} parent=23 // pred_check_branch
          %189 = sbr.rel (%p187) target = $region28
        $region27: #{tpu_custom_call.1} parent=23 // pred_region
          %s190 = sand.u32 %s40, 1
          %s191 = scalar_lea.sflag [#allocation3], %s190
          %s192 = sand.u32 %s40, 1
          %s193 = smul.addr %s192, 32
          %s194 = scalar_lea.vmem [#allocation2], %s193
          %s195 = smul.u32 2, %s24
          %s197 = ssub.s32 512, 512
          %198 = vsyncadd %s191, %s197
          %s199 = smul.addr %s195, 2
          %s200 = smul.addr %s23, 4
          %s201 = sadd.s32 %s199, %s200
          %s202 = smul.addr %s201, 128
          %s203 = scalar_lea.hbm %s0, %s202
          %s204 = sshll.u32 %s194, 4
          %s205 = int_to_ptr.vmem [resolvable:$true] %s204
          %210 = dma.hbm_to_vmem [thread:$0]  %s203, 512, %s205, %s191, 256, 256, 16
        $region28: #{tpu_custom_call.1} parent=23 // pred_fallthru
          _
      $region24: #{tpu_custom_call.1} parent=5 // pred_fallthru
        _
      %p211 = scmp.le.s32.totalorder 1, %s16
      %p212 = scmp.lt.s32.totalorder %s16, 3
      %p213 = pnand %p211, %p212
      %p214 = pneg %p213
      // Predicated region
      $region29: #{tpu_custom_call.1} parent=5 // pred_check
        _
      $region30: #{tpu_custom_call.1} parent=5 // pred_check_branch
        %216 = sbr.rel (%p213) target = $region32
      $region31: #{tpu_custom_call.1} parent=5 // pred_region
        %s217 = ssub.s32 %s16, 1
        %s218 = sand.u32 %s43, 1
        %s219 = scalar_lea.sflag [#allocation3], %s218
        %s220 = sand.u32 %s43, 1
        %s221 = smul.addr %s220, 32
        %s222 = scalar_lea.vmem [#allocation2], %s221
        // Predicated region
        $region33: #{tpu_custom_call.1} parent=31 // pred_check
          %p223 = pneg %p56
        $region34: #{tpu_custom_call.1} parent=31 // pred_check_branch
          %225 = sbr.rel (%p223) target = $region36
        $region35: #{tpu_custom_call.1} parent=31 // pred_region
          %226 = dma.done %s219, 512
        $region36: #{tpu_custom_call.1} parent=31 // pred_fallthru
          _
        // Predicated region
        $region37: #{tpu_custom_call.1} parent=31 // pred_check
          %p227 = pneg %p82
        $region38: #{tpu_custom_call.1} parent=31 // pred_check_branch
          %229 = sbr.rel (%p227) target = $region40
        $region39: #{tpu_custom_call.1} parent=31 // pred_region
          %230 = dma.done [#allocation6], 256
        $region40: #{tpu_custom_call.1} parent=31 // pred_fallthru
          _
        // Predicated region
        $region41: #{tpu_custom_call.1} parent=31 // pred_check
          %p231 = pneg %p108
        $region42: #{tpu_custom_call.1} parent=31 // pred_check_branch
          %233 = sbr.rel (%p231) target = $region44
        $region43: #{tpu_custom_call.1} parent=31 // pred_region
          %234 = dma.done [#allocation6], 256
        $region44: #{tpu_custom_call.1} parent=31 // pred_fallthru
          _
        %s235 = sand.u32 %s43, 1
        %s236 = scalar_lea.sflag [#allocation3], %s235
        %s237 = sand.u32 %s43, 1
        %s238 = smul.addr %s237, 32
        %s239 = scalar_lea.vmem [#allocation2], %s238
        %p240 = pneg %p56
        %p241 = pneg %p53
        %p242 = pneg %p82
        %p243 = pneg %p79
        %p244 = pneg %p108
        %p245 = pneg %p105
        %p246 = pneg %p136
        %p247 = pneg %p133
        %s248 = sand.u32 %s123, 1
        %s249 = scalar_lea.sflag [#allocation4], %s248
        %s250 = sand.u32 %s123, 1
        %s251 = smul.addr %s250, 32
        %s252 = scalar_lea.vmem [#allocation8], %s251
        %s253 = smul.u32 2, %s26
        %s254 = smul.u32 2, %s26
        %s255 = smul.u32 2, %s26
        %s256 = smul.u32 2, %s26
        %v257 = vld [vmem:[%s222] sm:$0xff]
        %v258 = vld [vmem:[%s222 + $0x10] sm:$0xff]
        %259 = vrot.lane.b32.xlu0 %v257, 64
        %v260 = vpop.permute.xlu0 %259
        %261 = vrot.lane.b32.xlu0 %v258, 64
        %v262 = vpop.permute.xlu0 %261
        %v263 = vld [vmem:[#allocation5] sm:$0xff]
        %v264 = vld [vmem:[#allocation5 + $0x8] sm:$0xff]
        %v265 = vmul.f32 %v257, %v263
        %v266 = vmul.f32 %v258, %v264
        %v267 = vld [vmem:[#allocation7] sm:$0xff]
        %v268 = vld [vmem:[#allocation7 + $0x8] sm:$0xff]
        %v269 = vmul.f32 %v260, %v267
        %v270 = vmul.f32 %v262, %v268
        %v271 = vadd.f32 %v265, %v269
        %v272 = vadd.f32 %v266, %v270
        %273 = vst [vmem:[%s252] sm:$0xff] %v271
        %274 = vst [vmem:[%s252 + $0x10] sm:$0xff] %v272
        %v275 = vld [vmem:[%s222 + $0x8] sm:$0xff]
        %v276 = vld [vmem:[%s222 + $0x18] sm:$0xff]
        %277 = vst [vmem:[%s252 + $0x8] sm:$0xff] %v275
        %278 = vst [vmem:[%s252 + $0x18] sm:$0xff] %v276
        %s279 = sand.u32 %s123, 1
        %s280 = scalar_lea.sflag [#allocation4], %s279
        %s281 = sand.u32 %s123, 1
        %s282 = smul.addr %s281, 32
        %s283 = scalar_lea.vmem [#allocation8], %s282
        // Predicated region
        $region45: #{tpu_custom_call.1} parent=31 // pred_check
          %p284 = pneg %p133
        $region46: #{tpu_custom_call.1} parent=31 // pred_check_branch
          %286 = sbr.rel (%p284) target = $region48
        $region47: #{tpu_custom_call.1} parent=31 // pred_region
          %s287 = smul.u32 2, %s26
          %s289 = ssub.s32 512, 512
          %290 = vsyncadd %s280, %s289
          %s291 = smul.addr %s287, 2
          %s292 = smul.addr %s25, 4
          %s293 = sadd.s32 %s291, %s292
          %s294 = smul.addr %s293, 128
          %s295 = scalar_lea.hbm %s3, %s294
          %s296 = sshll.u32 %s283, 4
          %s297 = int_to_ptr.vmem [resolvable:$true] %s296
          %302 = dma.vmem_to_hbm [thread:$0]  %s297, 512, %s295, %s280, 256, 256, 16
        $region48: #{tpu_custom_call.1} parent=31 // pred_fallthru
          _
      $region32: #{tpu_custom_call.1} parent=5 // pred_fallthru
        _
      %p303 = scmp.le.s32.totalorder 2, %s16
      // Predicated region
      $region49: #{tpu_custom_call.1} parent=5 // pred_check
        %p304 = pneg %p303
      $region50: #{tpu_custom_call.1} parent=5 // pred_check_branch
        %306 = sbr.rel (%p304) target = $region52
      $region51: #{tpu_custom_call.1} parent=5 // pred_region
        %s307 = ssub.s32 %s16, 2
        // Predicated region
        $region53: #{tpu_custom_call.1} parent=51 // pred_check
          %p308 = pneg %p139
        $region54: #{tpu_custom_call.1} parent=51 // pred_check_branch
          %310 = sbr.rel (%p308) target = $region56
        $region55: #{tpu_custom_call.1} parent=51 // pred_region
          %s311 = sand.u32 %s124, 1
          %s312 = scalar_lea.sflag [#allocation4], %s311
          %s313 = sand.u32 %s124, 1
          %s314 = smul.addr %s313, 32
          %s315 = scalar_lea.vmem [#allocation8], %s314
          %316 = dma.done %s312, 512
        $region56: #{tpu_custom_call.1} parent=51 // pred_fallthru
          _
      $region52: #{tpu_custom_call.1} parent=5 // pred_fallthru
        _
    $region6: #{tpu_custom_call.1} parent=1 // loop_footer
      %s20 = sadd.s32 1, %s16
    $region7: #{tpu_custom_call.1} parent=1 // loop_footer_branch
      %15 = sbr.rel target = $region3
    $region8: #{tpu_custom_call.1} parent=1 // loop_exit
      _
    %317 = vsyncpa [#allocation3], 1
    %s318 = scalar_lea.sflag [#allocation3], 1
    %319 = vsyncpa %s318, 1
    %320 = vsyncpa [#allocation6], 1
    %321 = vsyncpa [#allocation4], 1
    %s322 = scalar_lea.sflag [#allocation4], 1
    %323 = vsyncpa %s322, 1

</llo_original>
